<compile_context>
chip_gen: v7x
topology: tpu7x:2x2x1
jax: 0.10.0
libtpu: 0.0.40
codegen_flags: <defaults>
</compile_context>

<pallas_src>
import functools

import jax
import jax.numpy as jnp
from jax.experimental import pallas as pl
from jax.experimental.pallas import tpu as pltpu

IGNORE_INDEX = 11


def _ce2d_kernel(logits_ref, tgt_ref, w_ref, num_ref, den_ref,
                 num_acc, den_acc, *, hw, tile_hw, n_inner,
                 need_lane_mask, need_ignore_compare):
    jo = pl.program_id(1)
    ji = pl.program_id(2)

    @pl.when(ji == 0)
    def _():
        num_acc[...] = jnp.zeros_like(num_acc)
        den_acc[...] = jnp.zeros_like(den_acc)

    x = logits_ref[0].astype(jnp.float32)            # (C, T) classes x pixels
    c, thw = x.shape
    t = tgt_ref[0]                                   # (1, T) int32

    if need_lane_mask:
        # Global pixel index of each lane in this tile; tiles past the true
        # image end (ragged last tile / duplicated tile from the core split)
        # are masked out.  Sanitize the logits too: garbage lanes may hold
        # NaN/Inf and NaN*0 would poison the accumulators.
        j = jo * n_inner + ji                        # unclamped tile index
        lane = jax.lax.broadcasted_iota(jnp.int32, (1, thw), 1)
        lane_ok = (j * tile_hw + lane) < hw          # (1, T) bool
        x = jnp.where(lane_ok, x, 0.0)

    # log-softmax pieces over the class (sublane) axis.
    m = jnp.max(x, axis=0, keepdims=True)            # (1, T)
    xs = x - m
    lse = jnp.log(jnp.sum(jnp.exp(xs), axis=0, keepdims=True))   # (1, T)

    # Tiny (C,1) iota (broadcast_in_dim is not CSE'd; don't rebuild (C,T)).
    cls = jax.lax.broadcasted_iota(jnp.int32, (c, 1), 0)
    onehot = (cls == t).astype(jnp.float32)          # (C, T)

    # picked log-prob and per-pixel weight without materializing log-softmax.
    picked = jnp.sum(xs * onehot, axis=0, keepdims=True) - lse    # (1, T)
    wv = jnp.sum(w_ref[0] * onehot, axis=0, keepdims=True)        # (1, T)

    if need_ignore_compare:
        # Only when IGNORE_INDEX is not a real class id (can't fold into w).
        wv = wv * (t != IGNORE_INDEX).astype(jnp.float32)
    if need_lane_mask:
        wv = wv * lane_ok.astype(jnp.float32)

    # Lane-dense partial accumulation; defer the scalar reduction.
    num_acc[...] += -picked * wv
    den_acc[...] += wv

    @pl.when(ji == pl.num_programs(2) - 1)
    def _():
        num_ref[...] = jnp.sum(num_acc[...]).reshape(1, 1, 1, 1)
        den_ref[...] = jnp.sum(den_acc[...]).reshape(1, 1, 1, 1)


def _round_up(x, m):
    return ((x + m - 1) // m) * m


def cross_entropy_loss_2d(inputs, targets, class_weight, *, tile_hw=32768):
    """inputs: (N, C, H, W) float (bf16 or f32), targets: (N, H, W) int,
    class_weight: (C,).  Feed bf16 logits directly for ~2x less HBM traffic;
    the kernel upcasts to f32 in VMEM."""
    n, c, h, w = inputs.shape
    hw = h * w

    # Native NCHW: just merge H, W (no transpose, no pad, no extra HBM pass).
    logits = inputs.reshape(n, c, hw)
    tgt = targets.reshape(n, 1, hw).astype(jnp.int32)

    # Large lane-dense tiles; clamp to the (128-padded) image size.
    tile_hw = min(tile_hw, _round_up(hw, 128))
    tiles = -(-hw // tile_hw)                        # cdiv

    # Split the pixel-tile axis so both v7x TensorCores get work even at N=1
    # (no-op on single-TC v5e/v6e).
    n_outer = 2 if tiles >= 2 else 1
    n_inner = -(-tiles // n_outer)

    need_lane_mask = (hw % tile_hw != 0) or (n_outer * n_inner != tiles)

    # Fold ignore_index into the weight table when it addresses a real class.
    weight = jnp.asarray(class_weight, dtype=jnp.float32)
    need_ignore_compare = not (0 <= IGNORE_INDEX < c)
    if not need_ignore_compare:
        weight = weight.at[IGNORE_INDEX].set(0.0)
    weight3d = weight.reshape(1, c, 1)

    j_last = tiles - 1

    def pix_map(b, jo, ji):
        # Clamp so the duplicated tile from the core split never issues an
        # out-of-range block; its lanes are masked out in the kernel anyway.
        return (b, 0, jnp.minimum(jo * n_inner + ji, j_last))

    kernel = functools.partial(
        _ce2d_kernel, hw=hw, tile_hw=tile_hw, n_inner=n_inner,
        need_lane_mask=need_lane_mask,
        need_ignore_compare=need_ignore_compare)

    num, den = pl.pallas_call(
        kernel,
        out_shape=(jax.ShapeDtypeStruct((n, n_outer, 1, 1), jnp.float32),
                   jax.ShapeDtypeStruct((n, n_outer, 1, 1), jnp.float32)),
        grid_spec=pltpu.PrefetchScalarGridSpec(
            num_scalar_prefetch=0,
            grid=(n, n_outer, n_inner),
            in_specs=[
                pl.BlockSpec((1, c, tile_hw), pix_map),
                pl.BlockSpec((1, 1, tile_hw), pix_map),
                pl.BlockSpec((1, c, 1), lambda b, jo, ji: (0, 0, 0)),
            ],
            out_specs=[
                pl.BlockSpec((1, 1, 1, 1), lambda b, jo, ji: (b, jo, 0, 0)),
                pl.BlockSpec((1, 1, 1, 1), lambda b, jo, ji: (b, jo, 0, 0)),
            ],
            scratch_shapes=[
                pltpu.VMEM((1, tile_hw), jnp.float32),
                pltpu.VMEM((1, tile_hw), jnp.float32),
            ],
        ),
        compiler_params=pltpu.CompilerParams(
            dimension_semantics=("parallel", "parallel", "arbitrary"),
            vmem_limit_bytes=32 * 1024 * 1024),
    )(logits, tgt, weight3d)

    # size_average=True with weights: weighted mean over non-ignored pixels.
    # (If every pixel is ignore_index this is 0/0 = NaN, matching PyTorch.)
    return jnp.sum(num) / jnp.sum(den)


def _reference(inputs, targets, class_weight):
    n, c, h, w = inputs.shape
    lsm = jax.nn.log_softmax(inputs.astype(jnp.float32), axis=1)
    lsm = jnp.transpose(lsm, (0, 2, 3, 1)).reshape(-1, c)
    t = targets.reshape(-1)
    valid = (t != IGNORE_INDEX)
    t_safe = jnp.where(valid, t, 0)
    picked = jnp.take_along_axis(lsm, t_safe[:, None], axis=1)[:, 0]
    wt = class_weight[t_safe] * valid.astype(jnp.float32)
    return jnp.sum(-picked * wt) / jnp.sum(wt)


if __name__ == "__main__":
    key = jax.random.PRNGKey(0)
    k1, k2, k3, k4 = jax.random.split(key, 4)

    C = 12                                   # ignore_index=11 is a real class
    class_weight = 0.5 + jnp.arange(C, dtype=jnp.float32) / (2.0 * C)

    # Case 1: pixel count divides the tile exactly (16x16 = 256 pixels), f32.
    N, H, W = 2, 16, 16
    x = jax.random.normal(k1, (N, C, H, W), dtype=jnp.float32)
    t = jax.random.randint(k2, (N, H, W), 0, C, dtype=jnp.int32)
    loss = jax.block_until_ready(cross_entropy_loss_2d(x, t, class_weight))
    ref = _reference(x, t, class_weight)
    assert jnp.allclose(loss, ref, rtol=1e-4, atol=1e-5), (loss, ref)

    # Case 2: ragged pixel count + multi-tile grid (exercises the in-kernel
    # lane mask, the clamped duplicate tile from the core split, and the
    # accumulator init/finalize along the inner grid axis).
    N, H, W = 1, 16, 17                      # hw = 272
    x2 = jax.random.normal(k3, (N, C, H, W), dtype=jnp.float32)
    t2 = jax.random.randint(k4, (N, H, W), 0, C, dtype=jnp.int32)
    loss2 = jax.block_until_ready(
        cross_entropy_loss_2d(x2, t2, class_weight, tile_hw=128))
    ref2 = _reference(x2, t2, class_weight)
    assert jnp.allclose(loss2, ref2, rtol=1e-4, atol=1e-5), (loss2, ref2)

    # Case 3: bf16 logits fed end-to-end (kernel upcasts in VMEM).
    xb = x.astype(jnp.bfloat16)
    loss3 = jax.block_until_ready(cross_entropy_loss_2d(xb, t, class_weight))
    ref3 = _reference(xb, t, class_weight)
    assert jnp.allclose(loss3, ref3, rtol=1e-3, atol=1e-4), (loss3, ref3)

    print("KERNEL_OK")
</pallas_src>

<mosaic_0001>
module attributes {stable_mosaic.version = 11 : i64} {
  func.func @_ce2d_kernel(%arg0: i32, %arg1: i32, %arg2: i32, %arg3: memref<1x12x256xf32, #tpu.memory_space<vmem>>, %arg4: memref<1x1x256xi32, #tpu.memory_space<vmem>>, %arg5: memref<1x12x1xf32, #tpu.memory_space<vmem>>, %arg6: memref<1x1x1x1xf32, #tpu.memory_space<vmem>>, %arg7: memref<1x1x1x1xf32, #tpu.memory_space<vmem>>, %arg8: memref<1x256xf32, #tpu.memory_space<vmem>>, %arg9: memref<1x256xf32, #tpu.memory_space<vmem>>) attributes {dimension_semantics = [#tpu.dimension_semantics<parallel>, #tpu.dimension_semantics<parallel>, #tpu.dimension_semantics<arbitrary>], iteration_bounds = array<i64: 2, 1, 1>, scalar_prefetch = 0 : i64, scratch_operands = 2 : i64, tpu.core_type = #tpu.core_type<tc>, window_params = [{transform_indices = @transform_0, window_bounds = array<i64: 1, 12, 256>}, {transform_indices = @transform_1, window_bounds = array<i64: 1, 1, 256>}, {pipeline_mode = #tpu.pipeline_mode<synchronous>, transform_indices = @transform_2, window_bounds = array<i64: 1, 12, 1>}, {transform_indices = @transform_3, window_bounds = array<i64: 1, 1, 1, 1>}, {transform_indices = @transform_4, window_bounds = array<i64: 1, 1, 1, 1>}]} {
    %c0_i32 = arith.constant 0 : i32
    %0 = arith.cmpi eq, %arg2, %c0_i32 : i32
    %1 = arith.extui %0 : i1 to i32
    %c0_i32_0 = arith.constant 0 : i32
    %2 = arith.cmpi ne, %1, %c0_i32_0 : i32
    scf.if %2 {
      %cst_23 = arith.constant 0.000000e+00 : f32
      %43 = vector.broadcast %cst_23 : f32 to vector<1x256xf32>
      %c0_24 = arith.constant 0 : index
      %c0_25 = arith.constant 0 : index
      %44 = vector.load %arg8[%c0_24, %c0_25] : memref<1x256xf32, #tpu.memory_space<vmem>>, vector<1x256xf32>
      tpu.vector_store %arg8[%c0_24, %c0_25], %43 {strides = array<i32>} : memref<1x256xf32, #tpu.memory_space<vmem>>, vector<1x256xf32>,
      %cst_26 = arith.constant 0.000000e+00 : f32
      %45 = vector.broadcast %cst_26 : f32 to vector<1x256xf32>
      %c0_27 = arith.constant 0 : index
      %c0_28 = arith.constant 0 : index
      %46 = vector.load %arg9[%c0_27, %c0_28] : memref<1x256xf32, #tpu.memory_space<vmem>>, vector<1x256xf32>
      tpu.vector_store %arg9[%c0_27, %c0_28], %45 {strides = array<i32>} : memref<1x256xf32, #tpu.memory_space<vmem>>, vector<1x256xf32>,
    } else {
    }
    %c0 = arith.constant 0 : index
    %c0_1 = arith.constant 0 : index
    %c0_2 = arith.constant 0 : index
    %3 = vector.load %arg3[%c0, %c0_1, %c0_2] : memref<1x12x256xf32, #tpu.memory_space<vmem>>, vector<1x12x256xf32>
    %4 = vector.shape_cast %3 : vector<1x12x256xf32> to vector<12x256xf32>
    %c0_3 = arith.constant 0 : index
    %c0_4 = arith.constant 0 : index
    %c0_5 = arith.constant 0 : index
    %5 = vector.load %arg4[%c0_3, %c0_4, %c0_5] : memref<1x1x256xi32, #tpu.memory_space<vmem>>, vector<1x1x256xi32>
    %6 = vector.shape_cast %5 : vector<1x1x256xi32> to vector<1x256xi32>
    %cst = arith.constant dense<0xFF800000> : vector<256xf32>
    %7 = vector.multi_reduction <maximumf>, %4, %cst [0] : vector<12x256xf32> to vector<256xf32>
    %8 = vector.shape_cast %7 : vector<256xf32> to vector<1x256xf32>
    %9 = vector.broadcast %8 : vector<1x256xf32> to vector<12x256xf32>
    %10 = arith.subf %4, %9 : vector<12x256xf32>
    %11 = math.exp %10 : vector<12x256xf32>
    %cst_6 = arith.constant dense<0.000000e+00> : vector<256xf32>
    %12 = vector.multi_reduction <add>, %11, %cst_6 [0] : vector<12x256xf32> to vector<256xf32>
    %13 = vector.shape_cast %12 : vector<256xf32> to vector<1x256xf32>
    %14 = math.log %13 : vector<1x256xf32>
    %15 = tpu.iota {dimensions = array<i32: 0>} : vector<12x1xi32>
    %16 = vector.broadcast %15 : vector<12x1xi32> to vector<12x256xi32>
    %17 = vector.broadcast %6 : vector<1x256xi32> to vector<12x256xi32>
    %18 = arith.cmpi eq, %16, %17 : vector<12x256xi32>
    %19 = arith.extui %18 : vector<12x256xi1> to vector<12x256xi32>
    %20 = arith.sitofp %19 : vector<12x256xi32> to vector<12x256xf32>
    %21 = arith.mulf %10, %20 : vector<12x256xf32>
    %cst_7 = arith.constant dense<0.000000e+00> : vector<256xf32>
    %22 = vector.multi_reduction <add>, %21, %cst_7 [0] : vector<12x256xf32> to vector<256xf32>
    %23 = vector.shape_cast %22 : vector<256xf32> to vector<1x256xf32>
    %24 = arith.subf %23, %14 : vector<1x256xf32>
    %c0_8 = arith.constant 0 : index
    %c0_9 = arith.constant 0 : index
    %c0_10 = arith.constant 0 : index
    %25 = vector.load %arg5[%c0_8, %c0_9, %c0_10] : memref<1x12x1xf32, #tpu.memory_space<vmem>>, vector<1x12x1xf32>
    %26 = vector.shape_cast %25 : vector<1x12x1xf32> to vector<12x1xf32>
    %27 = vector.broadcast %26 : vector<12x1xf32> to vector<12x256xf32>
    %28 = arith.mulf %27, %20 : vector<12x256xf32>
    %cst_11 = arith.constant dense<0.000000e+00> : vector<256xf32>
    %29 = vector.multi_reduction <add>, %28, %cst_11 [0] : vector<12x256xf32> to vector<256xf32>
    %30 = vector.shape_cast %29 : vector<256xf32> to vector<1x256xf32>
    %c0_12 = arith.constant 0 : index
    %c0_13 = arith.constant 0 : index
    %31 = vector.load %arg8[%c0_12, %c0_13] : memref<1x256xf32, #tpu.memory_space<vmem>>, vector<1x256xf32>
    %cst_14 = arith.constant 0.000000e+00 : f32
    %32 = vector.broadcast %cst_14 : f32 to vector<1x256xf32>
    %33 = arith.subf %32, %24 : vector<1x256xf32>
    %34 = arith.mulf %33, %30 : vector<1x256xf32>
    %35 = arith.addf %31, %34 : vector<1x256xf32>
    %c0_15 = arith.constant 0 : index
    %c0_16 = arith.constant 0 : index
    %36 = vector.load %arg8[%c0_15, %c0_16] : memref<1x256xf32, #tpu.memory_space<vmem>>, vector<1x256xf32>
    tpu.vector_store %arg8[%c0_15, %c0_16], %35 {strides = array<i32>} : memref<1x256xf32, #tpu.memory_space<vmem>>, vector<1x256xf32>,
    %c0_17 = arith.constant 0 : index
    %c0_18 = arith.constant 0 : index
    %37 = vector.load %arg9[%c0_17, %c0_18] : memref<1x256xf32, #tpu.memory_space<vmem>>, vector<1x256xf32>
    %38 = arith.addf %37, %30 : vector<1x256xf32>
    %c0_19 = arith.constant 0 : index
    %c0_20 = arith.constant 0 : index
    %39 = vector.load %arg9[%c0_19, %c0_20] : memref<1x256xf32, #tpu.memory_space<vmem>>, vector<1x256xf32>
    tpu.vector_store %arg9[%c0_19, %c0_20], %38 {strides = array<i32>} : memref<1x256xf32, #tpu.memory_space<vmem>>, vector<1x256xf32>,
    %c0_i32_21 = arith.constant 0 : i32
    %40 = arith.cmpi eq, %arg2, %c0_i32_21 : i32
    %41 = arith.extui %40 : i1 to i32
    %c0_i32_22 = arith.constant 0 : i32
    %42 = arith.cmpi ne, %41, %c0_i32_22 : i32
    scf.if %42 {
      %c0_23 = arith.constant 0 : index
      %c0_24 = arith.constant 0 : index
      %43 = vector.load %arg8[%c0_23, %c0_24] : memref<1x256xf32, #tpu.memory_space<vmem>>, vector<1x256xf32>
      %44 = vector.shape_cast %43 : vector<1x256xf32> to vector<1x1x256xf32>
      %cst_25 = arith.constant dense<0.000000e+00> : vector<1xf32>
      %45 = vector.multi_reduction <add>, %44, %cst_25 [1, 2] : vector<1x1x256xf32> to vector<1xf32>
      %46 = vector.shape_cast %45 : vector<1xf32> to vector<1x1x1xf32>
      %47 = vector.extract %46[0, 0, 0] : f32 from vector<1x1x1xf32>
      %48 = vector.broadcast %47 : f32 to vector<1x1x1x1xf32>
      %c0_26 = arith.constant 0 : index
      %c0_27 = arith.constant 0 : index
      %c0_28 = arith.constant 0 : index
      %c0_29 = arith.constant 0 : index
      %49 = vector.load %arg6[%c0_26, %c0_27, %c0_28, %c0_29] : memref<1x1x1x1xf32, #tpu.memory_space<vmem>>, vector<1x1x1x1xf32>
      tpu.vector_store %arg6[%c0_26, %c0_27, %c0_28, %c0_29], %48 {strides = array<i32>} : memref<1x1x1x1xf32, #tpu.memory_space<vmem>>, vector<1x1x1x1xf32>,
      %c0_30 = arith.constant 0 : index
      %c0_31 = arith.constant 0 : index
      %50 = vector.load %arg9[%c0_30, %c0_31] : memref<1x256xf32, #tpu.memory_space<vmem>>, vector<1x256xf32>
      %51 = vector.shape_cast %50 : vector<1x256xf32> to vector<1x1x256xf32>
      %cst_32 = arith.constant dense<0.000000e+00> : vector<1xf32>
      %52 = vector.multi_reduction <add>, %51, %cst_32 [1, 2] : vector<1x1x256xf32> to vector<1xf32>
      %53 = vector.shape_cast %52 : vector<1xf32> to vector<1x1x1xf32>
      %54 = vector.extract %53[0, 0, 0] : f32 from vector<1x1x1xf32>
      %55 = vector.broadcast %54 : f32 to vector<1x1x1x1xf32>
      %c0_33 = arith.constant 0 : index
      %c0_34 = arith.constant 0 : index
      %c0_35 = arith.constant 0 : index
      %c0_36 = arith.constant 0 : index
      %56 = vector.load %arg7[%c0_33, %c0_34, %c0_35, %c0_36] : memref<1x1x1x1xf32, #tpu.memory_space<vmem>>, vector<1x1x1x1xf32>
      tpu.vector_store %arg7[%c0_33, %c0_34, %c0_35, %c0_36], %55 {strides = array<i32>} : memref<1x1x1x1xf32, #tpu.memory_space<vmem>>, vector<1x1x1x1xf32>,
    } else {
    }
    return
  }
  func.func @transform_0(%arg0: i32, %arg1: i32, %arg2: i32) -> (i32, i32, i32) {
    %c1_i32 = arith.constant 1 : i32
    %0 = arith.muli %arg1, %c1_i32 : i32
    %1 = arith.addi %0, %arg2 : i32
    %c0_i32 = arith.constant 0 : i32
    %2 = arith.minsi %1, %c0_i32 : i32
    %c0_i32_0 = arith.constant 0 : i32
    %c0_i32_1 = arith.constant 0 : i32
    return %arg0, %c0_i32_0, %2 : i32, i32, i32
  }
  func.func @transform_1(%arg0: i32, %arg1: i32, %arg2: i32) -> (i32, i32, i32) {
    %c1_i32 = arith.constant 1 : i32
    %0 = arith.muli %arg1, %c1_i32 : i32
    %1 = arith.addi %0, %arg2 : i32
    %c0_i32 = arith.constant 0 : i32
    %2 = arith.minsi %1, %c0_i32 : i32
    %c0_i32_0 = arith.constant 0 : i32
    %c0_i32_1 = arith.constant 0 : i32
    return %arg0, %c0_i32_0, %2 : i32, i32, i32
  }
  func.func @transform_2(%arg0: i32, %arg1: i32, %arg2: i32) -> (i32, i32, i32) {
    %c0_i32 = arith.constant 0 : i32
    %c0_i32_0 = arith.constant 0 : i32
    %c0_i32_1 = arith.constant 0 : i32
    %c0_i32_2 = arith.constant 0 : i32
    return %c0_i32, %c0_i32_0, %c0_i32_1 : i32, i32, i32
  }
  func.func @transform_3(%arg0: i32, %arg1: i32, %arg2: i32) -> (i32, i32, i32, i32) {
    %c0_i32 = arith.constant 0 : i32
    %c0_i32_0 = arith.constant 0 : i32
    %c0_i32_1 = arith.constant 0 : i32
    return %arg0, %arg1, %c0_i32, %c0_i32_0 : i32, i32, i32, i32
  }
  func.func @transform_4(%arg0: i32, %arg1: i32, %arg2: i32) -> (i32, i32, i32, i32) {
    %c0_i32 = arith.constant 0 : i32
    %c0_i32_0 = arith.constant 0 : i32
    %c0_i32_1 = arith.constant 0 : i32
    return %arg0, %arg1, %c0_i32, %c0_i32_0 : i32, i32, i32, i32
  }
}

</mosaic_0001>

<llo_original>
// kernel: tpu_custom_call.1
$region0: #{tpu_custom_call.1}
  #allocation0 [shape = 'u32[]', space=smem, size = 0x4, offset = 0x4, fixed_abs, tag = 'smem constant byte address 0x4 - core index']
  #allocation1 [shape = 'u32[144,128]{1,0:T(1,128)}', space=vmem, size = 0x12000, scoped, tag = 'internal scratch']
  #allocation2 [shape = 'f32[1,256]{1,0:T(1,128)}', space=vmem, size = 0x400, scoped, tag = 'scratch operand']
  #allocation3 [shape = 'f32[1,256]{1,0:T(1,128)}', space=vmem, size = 0x400, scoped, tag = 'scratch operand']
  %s0 = inlined_call_operand.vmem [shape: f32[2,12,256], index: 0, kind: input, shape index: {}]
  %s1 = inlined_call_operand.vmem [shape: s32[2,1,256], index: 1, kind: input, shape index: {}]
  %s2 = inlined_call_operand.vmem [shape: f32[1,12,1], index: 2, kind: input, shape index: {}]
  %s3 = inlined_call_operand.vmem [shape: f32[2,1,1,1], index: 3, kind: output, shape index: {0}]
  %s4 = inlined_call_operand.vmem [shape: f32[2,1,1,1], index: 4, kind: output, shape index: {1}]
  %5 = xla_tuple %s3, %s4
  %s6 = sld [smem:[#allocation0]]
  $region61: #{tpu_custom_call.1} parent=0
    _
  %s8 = ssub.s32 1, %s6
  %s9 = scalar_select 0, %s8, %s6
  loop: start=0, step=1, limit=4
  $region2: #{tpu_custom_call.1} parent=0 // loop_pre_header
    _
  $region3: #{tpu_custom_call.1} parent=0 // loop_header
    %s11 = sphi 0, %s15
    %p12 = scmp.ge.s32.totalorder %s11, 4
    %s18 = sphi 0, %s37
    %s19 = sphi 0, %s33
    %s20 = sphi 0, %s29
    %s21 = sphi 0, %s18
    %s22 = sphi 0, %s19
    %s23 = sphi 0, %s20
    %s24 = sphi 0, %s21
    %s25 = sphi 0, %s22
    %s26 = sphi 0, %s23
    %s48 = sphi 0, %s50
    %s51 = sphi 0, %s48
    %s52 = sphi 0, %s51
    %s68 = sphi 0, %s52
    %s82 = sphi 0, %s84
    %s85 = sphi 0, %s82
    %s86 = sphi 0, %s85
    %s102 = sphi 0, %s86
    %s106 = sphi 0, %s106
    %s108 = sphi 0, %s106
    %s109 = sphi 0, %s108
    %s123 = sphi 0, %s109
    %s131 = sphi 0, %s133
    %s134 = sphi 0, %s131
    %s135 = sphi 0, %s134
    %s151 = sphi 0, %s135
    %s159 = sphi 0, %s161
    %s162 = sphi 0, %s159
    %s163 = sphi 0, %s162
    %s179 = sphi 0, %s163
  $region4: #{tpu_custom_call.1} parent=0 // loop_header_branch
    %14 = sbr.rel (%p12) target = $region8
  $region5: #{tpu_custom_call.1} parent=0 // loop_body
    %s16 = ssub.s32 %s11, 1
    %s17 = ssub.s32 %s11, 2
    %s27 = sadd.s32 1, %s20
    %p28 = scmp.ge.s32.totalorder %s27, 1
    %s29 = scalar_select %p28, 0, %s27
    %s30 = sadd.s32 1, %s19
    %s31 = scalar_select %p28, %s30, %s19
    %p32 = scmp.ge.s32.totalorder %s31, 1
    %s33 = scalar_select %p32, 0, %s31
    %s34 = sadd.s32 1, %s18
    %s35 = scalar_select %p32, %s34, %s18
    %p36 = scmp.ge.s32.totalorder %s35, 2
    %s37 = scalar_select %p36, 0, %s35
    %s38 = sadd.s32 %s19, %s20
    %p39 = scmp.lt.s32.totalorder %s38, 0
    %s40 = scalar_select %p39, %s38, 0
    %s41 = sadd.s32 %s33, %s29
    %p42 = scmp.lt.s32.totalorder %s41, 0
    %s43 = scalar_select %p42, %s41, 0
    %s44 = ssub.s32 %s18, %s37
    %s45 = ssub.s32 %s40, %s43
    %s46 = sor.u32 %s44, %s45
    %p47 = scmp.eq.s32.totalorder %s46, 0
    %s49 = sadd.s32 %s48, 1
    %s50 = scalar_select %p47, %s48, %s49
    %p53 = pneg %p47
    %p54 = scmp.eq.s32.totalorder %s11, 1
    %p55 = por %p53, %p54
    %p56 = scmp.ne.s32.totalorder %s48, %s51
    %p57 = scmp.eq.s32.totalorder %s11, 0
    %p58 = por %p56, %p57
    %p59 = scmp.ne.s32.totalorder %s48, %s51
    %p60 = scmp.eq.s32.totalorder %s16, 1
    %p61 = por %p59, %p60
    %p62 = scmp.ne.s32.totalorder %s51, %s52
    %p63 = scmp.eq.s32.totalorder %s16, 0
    %p64 = por %p62, %p63
    %p65 = scmp.ne.s32.totalorder %s51, %s52
    %p66 = scmp.eq.s32.totalorder %s17, 1
    %p67 = por %p65, %p66
    %p69 = scmp.ne.s32.totalorder %s52, %s68
    %p70 = scmp.eq.s32.totalorder %s17, 0
    %p71 = por %p69, %p70
    %s72 = sadd.s32 %s19, %s20
    %p73 = scmp.lt.s32.totalorder %s72, 0
    %s74 = scalar_select %p73, %s72, 0
    %s75 = sadd.s32 %s33, %s29
    %p76 = scmp.lt.s32.totalorder %s75, 0
    %s77 = scalar_select %p76, %s75, 0
    %s78 = ssub.s32 %s18, %s37
    %s79 = ssub.s32 %s74, %s77
    %s80 = sor.u32 %s78, %s79
    %p81 = scmp.eq.s32.totalorder %s80, 0
    %s83 = sadd.s32 %s82, 1
    %s84 = scalar_select %p81, %s82, %s83
    %p87 = pneg %p81
    %p88 = scmp.eq.s32.totalorder %s11, 1
    %p89 = por %p87, %p88
    %p90 = scmp.ne.s32.totalorder %s82, %s85
    %p91 = scmp.eq.s32.totalorder %s11, 0
    %p92 = por %p90, %p91
    %p93 = scmp.ne.s32.totalorder %s82, %s85
    %p94 = scmp.eq.s32.totalorder %s16, 1
    %p95 = por %p93, %p94
    %p96 = scmp.ne.s32.totalorder %s85, %s86
    %p97 = scmp.eq.s32.totalorder %s16, 0
    %p98 = por %p96, %p97
    %p99 = scmp.ne.s32.totalorder %s85, %s86
    %p100 = scmp.eq.s32.totalorder %s17, 1
    %p101 = por %p99, %p100
    %p103 = scmp.ne.s32.totalorder %s86, %s102
    %p104 = scmp.eq.s32.totalorder %s17, 0
    %p105 = por %p103, %p104
    %s107 = sadd.s32 %s106, 1
    %p110 = scmp.eq.s32.totalorder %s11, 1
    %p111 = scmp.ne.s32.totalorder %s106, %s108
    %p112 = scmp.eq.s32.totalorder %s11, 0
    %p113 = por %p111, %p112
    %p114 = scmp.ne.s32.totalorder %s106, %s108
    %p115 = scmp.eq.s32.totalorder %s16, 1
    %p116 = por %p114, %p115
    %p117 = scmp.ne.s32.totalorder %s108, %s109
    %p118 = scmp.eq.s32.totalorder %s16, 0
    %p119 = por %p117, %p118
    %p120 = scmp.ne.s32.totalorder %s108, %s109
    %p121 = scmp.eq.s32.totalorder %s17, 1
    %p122 = por %p120, %p121
    %p124 = scmp.ne.s32.totalorder %s109, %s123
    %p125 = scmp.eq.s32.totalorder %s17, 0
    %p126 = por %p124, %p125
    %s127 = ssub.s32 %s18, %s37
    %s128 = ssub.s32 %s19, %s33
    %s129 = sor.u32 %s127, %s128
    %p130 = scmp.eq.s32.totalorder %s129, 0
    %s132 = sadd.s32 %s131, 1
    %s133 = scalar_select %p130, %s131, %s132
    %p136 = pneg %p130
    %p137 = scmp.eq.s32.totalorder %s11, 1
    %p138 = por %p136, %p137
    %p139 = scmp.ne.s32.totalorder %s131, %s134
    %p140 = scmp.eq.s32.totalorder %s11, 0
    %p141 = por %p139, %p140
    %p142 = scmp.ne.s32.totalorder %s131, %s134
    %p143 = scmp.eq.s32.totalorder %s16, 1
    %p144 = por %p142, %p143
    %p145 = scmp.ne.s32.totalorder %s134, %s135
    %p146 = scmp.eq.s32.totalorder %s16, 0
    %p147 = por %p145, %p146
    %p148 = scmp.ne.s32.totalorder %s134, %s135
    %p149 = scmp.eq.s32.totalorder %s17, 1
    %p150 = por %p148, %p149
    %p152 = scmp.ne.s32.totalorder %s135, %s151
    %p153 = scmp.eq.s32.totalorder %s17, 0
    %p154 = por %p152, %p153
    %s155 = ssub.s32 %s18, %s37
    %s156 = ssub.s32 %s19, %s33
    %s157 = sor.u32 %s155, %s156
    %p158 = scmp.eq.s32.totalorder %s157, 0
    %s160 = sadd.s32 %s159, 1
    %s161 = scalar_select %p158, %s159, %s160
    %p164 = pneg %p158
    %p165 = scmp.eq.s32.totalorder %s11, 1
    %p166 = por %p164, %p165
    %p167 = scmp.ne.s32.totalorder %s159, %s162
    %p168 = scmp.eq.s32.totalorder %s11, 0
    %p169 = por %p167, %p168
    %p170 = scmp.ne.s32.totalorder %s159, %s162
    %p171 = scmp.eq.s32.totalorder %s16, 1
    %p172 = por %p170, %p171
    %p173 = scmp.ne.s32.totalorder %s162, %s163
    %p174 = scmp.eq.s32.totalorder %s16, 0
    %p175 = por %p173, %p174
    %p176 = scmp.ne.s32.totalorder %s162, %s163
    %p177 = scmp.eq.s32.totalorder %s17, 1
    %p178 = por %p176, %p177
    %p180 = scmp.ne.s32.totalorder %s163, %s179
    %p181 = scmp.eq.s32.totalorder %s17, 0
    %p182 = por %p180, %p181
    %p183 = scmp.le.s32.totalorder 1, %s11
    %p184 = scmp.lt.s32.totalorder %s11, 3
    %p185 = pnand %p183, %p184
    %p186 = pneg %p185
    // Predicated region
    $region9: #{tpu_custom_call.1} parent=5 // pred_check
      _
    $region10: #{tpu_custom_call.1} parent=5 // pred_check_branch
      %188 = sbr.rel (%p185) target = $region12
    $region11: #{tpu_custom_call.1} parent=5 // pred_region
      %s189 = ssub.s32 %s11, 1
      // Predicated region
      $region13: #{tpu_custom_call.1} parent=11 // pred_check
        %p190 = pneg %p119
      $region14: #{tpu_custom_call.1} parent=11 // pred_check_branch
        %192 = sbr.rel (%p190) target = $region16
      $region15: #{tpu_custom_call.1} parent=11 // pred_region
        _
      $region16: #{tpu_custom_call.1} parent=11 // pred_fallthru
        _
    $region12: #{tpu_custom_call.1} parent=5 // pred_fallthru
      _
    %p193 = scmp.lt.s32.totalorder %s11, 2
    // Predicated region
    $region17: #{tpu_custom_call.1} parent=5 // pred_check
      %p194 = pneg %p193
    $region18: #{tpu_custom_call.1} parent=5 // pred_check_branch
      %196 = sbr.rel (%p194) target = $region20
    $region19: #{tpu_custom_call.1} parent=5 // pred_region
      // Predicated region
      $region21: #{tpu_custom_call.1} parent=19 // pred_check
        %p197 = pneg %p58
      $region22: #{tpu_custom_call.1} parent=19 // pred_check_branch
        %199 = sbr.rel (%p197) target = $region24
      $region23: #{tpu_custom_call.1} parent=19 // pred_region
        %s200 = sadd.s32 %s19, %s20
        %p201 = scmp.lt.s32.totalorder %s200, 0
        %s202 = scalar_select %p201, %s200, 0
        %s203 = smul.u32 2, %s202
        %p204 = scmp.lt.s32.totalorder %s18, 1
        %s205 = scalar_select %p204, %s18, 1
        %p206 = scmp.lt.s32.totalorder %s203, 1
        %s207 = scalar_select %p206, %s203, 1
        %s208 = smul.addr %s205, 4
        %s209 = sadd.s32 %s207, %s208
        %s210 = smul.addr %s209, 8
        %s211 = scalar_lea.vmem %s0, %s210
        %s212 = sadd.s32 %s19, %s20
        %p213 = scmp.lt.s32.totalorder %s212, 0
        %s214 = scalar_select %p213, %s212, 0
        %s215 = smul.u32 2, %s214
      $region24: #{tpu_custom_call.1} parent=19 // pred_fallthru
        _
      // Predicated region
      $region25: #{tpu_custom_call.1} parent=19 // pred_check
        %p216 = pneg %p92
      $region26: #{tpu_custom_call.1} parent=19 // pred_check_branch
        %218 = sbr.rel (%p216) target = $region28
      $region27: #{tpu_custom_call.1} parent=19 // pred_region
        %s219 = sadd.s32 %s19, %s20
        %p220 = scmp.lt.s32.totalorder %s219, 0
        %s221 = scalar_select %p220, %s219, 0
        %s222 = smul.u32 2, %s221
        %p223 = scmp.lt.s32.totalorder %s18, 1
        %s224 = scalar_select %p223, %s18, 1
        %p225 = scmp.lt.s32.totalorder %s222, 1
        %s226 = scalar_select %p225, %s222, 1
        %s227 = smul.addr %s224, 2
        %s228 = sadd.s32 %s226, %s227
        %s229 = scalar_lea.vmem %s1, %s228
        %s230 = sadd.s32 %s19, %s20
        %p231 = scmp.lt.s32.totalorder %s230, 0
        %s232 = scalar_select %p231, %s230, 0
        %s233 = smul.u32 2, %s232
      $region28: #{tpu_custom_call.1} parent=19 // pred_fallthru
        _
    $region20: #{tpu_custom_call.1} parent=5 // pred_fallthru
      _
    %p234 = scmp.le.s32.totalorder 1, %s11
    %p235 = scmp.lt.s32.totalorder %s11, 3
    %p236 = pnand %p234, %p235
    %p237 = pneg %p236
    // Predicated region
    $region29: #{tpu_custom_call.1} parent=5 // pred_check
      _
    $region30: #{tpu_custom_call.1} parent=5 // pred_check_branch
      %239 = sbr.rel (%p236) target = $region32
    $region31: #{tpu_custom_call.1} parent=5 // pred_region
      %s240 = ssub.s32 %s11, 1
      %s241 = sadd.s32 %s22, %s23
      %p242 = scmp.lt.s32.totalorder %s241, 0
      %s243 = scalar_select %p242, %s241, 0
      %s244 = smul.u32 2, %s243
      %p245 = scmp.lt.s32.totalorder %s21, 1
      %s246 = scalar_select %p245, %s21, 1
      %p247 = scmp.lt.s32.totalorder %s244, 1
      %s248 = scalar_select %p247, %s244, 1
      %s249 = smul.addr %s246, 4
      %s250 = sadd.s32 %s248, %s249
      %s251 = smul.addr %s250, 8
      %s252 = scalar_lea.vmem %s0, %s251
      %p253 = pneg %p64
      %p254 = pneg %p61
      %s255 = sadd.s32 %s22, %s23
      %p256 = scmp.lt.s32.totalorder %s255, 0
      %s257 = scalar_select %p256, %s255, 0
      %s258 = smul.u32 2, %s257
      %p259 = scmp.lt.s32.totalorder %s21, 1
      %s260 = scalar_select %p259, %s21, 1
      %p261 = scmp.lt.s32.totalorder %s258, 1
      %s262 = scalar_select %p261, %s258, 1
      %s263 = smul.addr %s260, 2
      %s264 = sadd.s32 %s262, %s263
      %s265 = scalar_lea.vmem %s1, %s264
      %p266 = pneg %p98
      %p267 = pneg %p95
      %p268 = pneg %p119
      %p269 = pneg %p116
      %p270 = pneg %p147
      %p271 = pneg %p144
      %p272 = scmp.lt.s32.totalorder %s21, 1
      %s273 = scalar_select %p272, %s21, 1
      %p274 = scmp.lt.s32.totalorder %s22, 0
      %s275 = scalar_select %p274, %s22, 0
      %s276 = sadd.s32 %s275, %s273
      %s277 = scalar_lea.vmem %s3, %s276
      %p278 = pneg %p175
      %p279 = pneg %p172
      %p280 = scmp.lt.s32.totalorder %s21, 1
      %s281 = scalar_select %p280, %s21, 1
      %p282 = scmp.lt.s32.totalorder %s22, 0
      %s283 = scalar_select %p282, %s22, 0
      %s284 = sadd.s32 %s283, %s281
      %s285 = scalar_lea.vmem %s4, %s284
      %s286 = sadd.s32 %s22, %s23
      %p287 = scmp.lt.s32.totalorder %s286, 0
      %s288 = scalar_select %p287, %s286, 0
      %s289 = smul.u32 2, %s288
      %p290 = scmp.lt.s32.totalorder %s21, 1
      %s291 = scalar_select %p290, %s21, 1
      %p292 = scmp.lt.s32.totalorder %s289, 1
      %s293 = scalar_select %p292, %s289, 1
      %s294 = smul.addr %s291, 4
      %s295 = sadd.s32 %s293, %s294
      %s296 = smul.addr %s295, 8
      %s297 = scalar_lea.vmem %s0, %s296
      %s298 = sadd.s32 %s22, %s23
      %p299 = scmp.lt.s32.totalorder %s298, 0
      %s300 = scalar_select %p299, %s298, 0
      %s301 = smul.u32 2, %s300
      %s302 = sadd.s32 %s22, %s23
      %p303 = scmp.lt.s32.totalorder %s302, 0
      %s304 = scalar_select %p303, %s302, 0
      %s305 = smul.u32 2, %s304
      %p306 = scmp.lt.s32.totalorder %s21, 1
      %s307 = scalar_select %p306, %s21, 1
      %p308 = scmp.lt.s32.totalorder %s305, 1
      %s309 = scalar_select %p308, %s305, 1
      %s310 = smul.addr %s307, 2
      %s311 = sadd.s32 %s309, %s310
      %s312 = scalar_lea.vmem %s1, %s311
      %s313 = sadd.s32 %s22, %s23
      %p314 = scmp.lt.s32.totalorder %s313, 0
      %s315 = scalar_select %p314, %s313, 0
      %s316 = smul.u32 2, %s315
      %p317 = scmp.lt.s32.totalorder %s21, 1
      %s318 = scalar_select %p317, %s21, 1
      %p319 = scmp.lt.s32.totalorder %s22, 0
      %s320 = scalar_select %p319, %s22, 0
      %s321 = sadd.s32 %s320, %s318
      %s322 = scalar_lea.vmem %s3, %s321
      %p323 = scmp.lt.s32.totalorder %s21, 1
      %s324 = scalar_select %p323, %s21, 1
      %p325 = scmp.lt.s32.totalorder %s22, 0
      %s326 = scalar_select %p325, %s22, 0
      %s327 = sadd.s32 %s326, %s324
      %s328 = scalar_lea.vmem %s4, %s327
      %p329 = scmp.eq.s32.totalorder %s23, 0
      // Predicated region
      $region33: #{tpu_custom_call.1} parent=31 // pred_check
        %p330 = pneg %p329
      $region34: #{tpu_custom_call.1} parent=31 // pred_check_branch
        %332 = sbr.rel (%p330) target = $region36
      $region35: #{tpu_custom_call.1} parent=31 // pred_region
        %v333 = vlaneseq
        %vm334 = vcmp.ge.s32.totalorder %v333, 0
        %vm335 = vcmp.lt.s32.totalorder %v333, 256
        %vm336 = vmand %vm334, %vm335
        %337 = vst.msk [vmem:[#allocation2] sm:$0x3] %vm336, 0.0
        %338 = vst.msk [vmem:[#allocation3] sm:$0x3] %vm336, 0.0
      $region36: #{tpu_custom_call.1} parent=31 // pred_fallthru
        _
      %v339 = vld [vmem:[%s297] sm:$0xff]
      %v340 = vld [vmem:[%s297 + $0x8] sm:$0xff]
      %v341 = vld [vmem:[%s297 + $0x10] sm:$0xf]
      %v342 = vld [vmem:[%s297 + $0x18] sm:$0xf]
      %v343 = vld [vmem:[%s312] sm:$0x3]
      %vm344 = vcmask 1043456
      %v345 = vsel %vm344, %v341, -inf
      %v346 = vmax.f32 %v339, %v345
      %v347 = vrot.slane %v346, 4
      %v348 = vmax.f32 %v346, %v347
      %v349 = vrot.slane %v348, 2
      %v350 = vmax.f32 %v348, %v349
      %v351 = vrot.slane %v350, 1
      %v352 = vmax.f32 %v350, %v351
      %v353 = vsel %vm344, %v342, -inf
      %v354 = vmax.f32 %v340, %v353
      %v355 = vrot.slane %v354, 4
      %v356 = vmax.f32 %v354, %v355
      %v357 = vrot.slane %v356, 2
      %v358 = vmax.f32 %v356, %v357
      %v359 = vrot.slane %v358, 1
      %v360 = vmax.f32 %v358, %v359
      %v361 = vsub.f32 %v339, %v352
      %v362 = vsub.f32 %v340, %v360
      %v363 = vsub.f32 %v341, %v352
      %v364 = vsub.f32 %v342, %v360
      %v365 = vmul.f32 %v361, 1.442695
      %v366 = vpow.pop %v365
      %v367 = vmul.f32 %v362, 1.442695
      %v368 = vpow.pop %v367
      %v369 = vmul.f32 %v363, 1.442695
      %v370 = vpow.pop %v369
      %v371 = vmul.f32 %v364, 1.442695
      %v372 = vpow.pop %v371
      %v373 = vsel %vm344, %v370, 0.0
      %v374 = vadd.f32 %v366, %v373
      %v375 = vrot.slane %v374, 4
      %v376 = vadd.f32 %v374, %v375
      %v377 = vrot.slane %v376, 2
      %v378 = vadd.f32 %v376, %v377
      %v379 = vrot.slane %v378, 1
      %v380 = vadd.f32 %v378, %v379
      %v381 = vsel %vm344, %v372, 0.0
      %v382 = vadd.f32 %v368, %v381
      %v383 = vrot.slane %v382, 4
      %v384 = vadd.f32 %v382, %v383
      %v385 = vrot.slane %v384, 2
      %v386 = vadd.f32 %v384, %v385
      %v387 = vrot.slane %v386, 1
      %v388 = vadd.f32 %v386, %v387
      %v389 = vlog2.pop %v380
      %v390 = vmul.f32 %v389, 0.6931472
      %v391 = vlog2.pop %v388
      %v392 = vmul.f32 %v391, 0.6931472
      %v393 = vlaneseq
      %v394 = vshrl.u32 %v393, 7
      %v395 = vadd.s32 %v394, 8
      %v396 = vlaneseq
      %v397 = vshrl.u32 %v396, 7
      %v398 = vsub.s32 0, %v397
      %v399 = vrot.slane %v343, %v398
      %v400 = vlaneseq
      %v401 = vshrl.u32 %v400, 7
      %v402 = vsub.s32 1, %v401
      %v403 = vrot.slane %v343, %v402
      %vm404 = vcmp.eq.s32.totalorder %v394, %v399
      %vm405 = vcmp.eq.s32.totalorder %v394, %v403
      %vm406 = vcmp.eq.s32.totalorder %v395, %v399
      %vm407 = vcmp.eq.s32.totalorder %v395, %v403
      %v408 = vsel %vm404, 1, 0
      %v409 = vsel %vm405, 1, 0
      %v410 = vsel %vm406, 1, 0
      %v411 = vsel %vm407, 1, 0
      %v412 = vcvt.s32.f32 %v408
      %v413 = vcvt.s32.f32 %v409
      %v414 = vcvt.s32.f32 %v410
      %v415 = vcvt.s32.f32 %v411
      %v416 = vmul.f32 %v361, %v412
      %v417 = vmul.f32 %v362, %v413
      %v418 = vmul.f32 %v363, %v414
      %v419 = vmul.f32 %v364, %v415
      %v420 = vsel %vm344, %v418, 0.0
      %v421 = vadd.f32 %v416, %v420
      %v422 = vrot.slane %v421, 4
      %v423 = vadd.f32 %v421, %v422
      %v424 = vrot.slane %v423, 2
      %v425 = vadd.f32 %v423, %v424
      %v426 = vrot.slane %v425, 1
      %v427 = vadd.f32 %v425, %v426
      %v428 = vsel %vm344, %v419, 0.0
      %v429 = vadd.f32 %v417, %v428
      %v430 = vrot.slane %v429, 4
      %v431 = vadd.f32 %v429, %v430
      %v432 = vrot.slane %v431, 2
      %v433 = vadd.f32 %v431, %v432
      %v434 = vrot.slane %v433, 1
      %v435 = vadd.f32 %v433, %v434
      %v436 = vsub.f32 %v427, %v390
      %v437 = vsub.f32 %v435, %v392
      %v438 = vld [vmem:[%s2] sm:$0xff]
      %v439 = vld [vmem:[%s2 + $0x8] sm:$0xf]
      %441 = vset.pattern.permute.xlu0 0
      %442 = vperm.xlu0 %441, %v438
      %v443 = vpop.permute.xlu0 %442
      %446 = vset.pattern.permute.xlu0 0
      %447 = vperm.xlu0 %446, %v439
      %v448 = vpop.permute.xlu0 %447
      %v450 = vmul.f32 %v443, %v412
      %v451 = vmul.f32 %v443, %v413
      %v452 = vmul.f32 %v448, %v414
      %v453 = vmul.f32 %v448, %v415
      %v454 = vsel %vm344, %v452, 0.0
      %v455 = vadd.f32 %v450, %v454
      %v456 = vrot.slane %v455, 4
      %v457 = vadd.f32 %v455, %v456
      %v458 = vrot.slane %v457, 2
      %v459 = vadd.f32 %v457, %v458
      %v460 = vrot.slane %v459, 1
      %v461 = vadd.f32 %v459, %v460
      %v462 = vsel %vm344, %v453, 0.0
      %v463 = vadd.f32 %v451, %v462
      %v464 = vrot.slane %v463, 4
      %v465 = vadd.f32 %v463, %v464
      %v466 = vrot.slane %v465, 2
      %v467 = vadd.f32 %v465, %v466
      %v468 = vrot.slane %v467, 1
      %v469 = vadd.f32 %v467, %v468
      %v470 = vld [vmem:[#allocation2] sm:$0x3]
      %v471 = vsub.f32 0.0, %v436
      %v472 = vsub.f32 0.0, %v437
      %v473 = vmul.f32 %v471, %v461
      %v474 = vmul.f32 %v472, %v469
      %v477 = vcombine.low %v473, %v474
      %v479 = vunpack.c.l.s4 1966171168
      %v480 = vunpack.c.0.s8 %v479
      %v481 = vlaneseq
      %v482 = vshrl.u32 %v481, 7
      %v483 = vsub.s32 %v480, %v482
      %v484 = vrot.slane %v477, %v483
      %v486 = vunpack.c.l.s4 1966171168
      %v487 = vunpack.c.0.s8 %v486
      %v488 = vlaneseq
      %v489 = vshrl.u32 %v488, 7
      %v490 = vsub.s32 %v487, %v489
      %v491 = vrot.slane %v484, %v490
      %v493 = vadd.f32 %v470, %v491
      %v494 = vlaneseq
      %vm495 = vcmp.ge.s32.totalorder %v494, 0
      %vm496 = vcmp.lt.s32.totalorder %v494, 256
      %vm497 = vmand %vm495, %vm496
      %498 = vst.msk [vmem:[#allocation2] sm:$0x3] %vm497, %v493
      %v499 = vld [vmem:[#allocation3] sm:$0x3]
      %v502 = vcombine.low %v461, %v469
      %v504 = vunpack.c.l.s4 1966171168
      %v505 = vunpack.c.0.s8 %v504
      %v506 = vlaneseq
      %v507 = vshrl.u32 %v506, 7
      %v508 = vsub.s32 %v505, %v507
      %v509 = vrot.slane %v502, %v508
      %v511 = vunpack.c.l.s4 1966171168
      %v512 = vunpack.c.0.s8 %v511
      %v513 = vlaneseq
      %v514 = vshrl.u32 %v513, 7
      %v515 = vsub.s32 %v512, %v514
      %v516 = vrot.slane %v509, %v515
      %v518 = vadd.f32 %v499, %v516
      %519 = vst.msk [vmem:[#allocation3] sm:$0x3] %vm497, %v518
      // Predicated region
      $region37: #{tpu_custom_call.1} parent=31 // pred_check
        %p520 = pneg %p329
      $region38: #{tpu_custom_call.1} parent=31 // pred_check_branch
        %522 = sbr.rel (%p520) target = $region40
      $region39: #{tpu_custom_call.1} parent=31 // pred_region
        %v523 = vld [vmem:[#allocation2] sm:$0x3]
        %v525 = vlaneseq
        %v526 = vshrl.u32 %v525, 7
        %v527 = vsub.s32 0, %v526
        %v528 = vrot.slane %v523, %v527
        %v529 = vlaneseq
        %v530 = vshrl.u32 %v529, 7
        %v531 = vsub.s32 1, %v530
        %v532 = vrot.slane %v523, %v531
        %vm535 = vcmask 1040384
        %v536 = vsel %vm535, %v528, 0.0
        %v537 = vsel %vm535, %v532, 0.0
        %v538 = vadd.f32 %v536, %v537
        %539 = vadd.xlane.f32.xlu0 %v538
        %v540 = vpop.xlane.xlu0 %539
        %v541 = vrot.slane %v540, 4
        %v542 = vadd.f32 %v540, %v541
        %v543 = vrot.slane %v542, 2
        %v544 = vadd.f32 %v542, %v543
        %v545 = vrot.slane %v544, 1
        %v546 = vadd.f32 %v544, %v545
        %s547 = vtos %v546
        %v548 = vstv %s547
        %vm549 = vcmask 0
        %550 = vst.msk [vmem:[%s322] sm:$0x1] %vm549, %v548
        %v551 = vld [vmem:[#allocation3] sm:$0x3]
        %v553 = vlaneseq
        %v554 = vshrl.u32 %v553, 7
        %v555 = vsub.s32 0, %v554
        %v556 = vrot.slane %v551, %v555
        %v557 = vlaneseq
        %v558 = vshrl.u32 %v557, 7
        %v559 = vsub.s32 1, %v558
        %v560 = vrot.slane %v551, %v559
        %v563 = vsel %vm535, %v556, 0.0
        %v564 = vsel %vm535, %v560, 0.0
        %v565 = vadd.f32 %v563, %v564
        %566 = vadd.xlane.f32.xlu0 %v565
        %v567 = vpop.xlane.xlu0 %566
        %v568 = vrot.slane %v567, 4
        %v569 = vadd.f32 %v567, %v568
        %v570 = vrot.slane %v569, 2
        %v571 = vadd.f32 %v569, %v570
        %v572 = vrot.slane %v571, 1
        %v573 = vadd.f32 %v571, %v572
        %s574 = vtos %v573
        %v575 = vstv %s574
        %576 = vst.msk [vmem:[%s328] sm:$0x1] %vm549, %v575
      $region40: #{tpu_custom_call.1} parent=31 // pred_fallthru
        _
      %p577 = scmp.lt.s32.totalorder %s21, 1
      %s578 = scalar_select %p577, %s21, 1
      %p579 = scmp.lt.s32.totalorder %s22, 0
      %s580 = scalar_select %p579, %s22, 0
      %s581 = sadd.s32 %s580, %s578
      %s582 = scalar_lea.vmem %s3, %s581
      %p583 = scmp.lt.s32.totalorder %s21, 1
      %s584 = scalar_select %p583, %s21, 1
      %p585 = scmp.lt.s32.totalorder %s22, 0
      %s586 = scalar_select %p585, %s22, 0
      %s587 = sadd.s32 %s586, %s584
      %s588 = scalar_lea.vmem %s4, %s587
      // Predicated region
      $region41: #{tpu_custom_call.1} parent=31 // pred_check
        %p589 = pneg %p144
      $region42: #{tpu_custom_call.1} parent=31 // pred_check_branch
        %591 = sbr.rel (%p589) target = $region44
      $region43: #{tpu_custom_call.1} parent=31 // pred_region
        _
      $region44: #{tpu_custom_call.1} parent=31 // pred_fallthru
        _
      // Predicated region
      $region45: #{tpu_custom_call.1} parent=31 // pred_check
        %p592 = pneg %p172
      $region46: #{tpu_custom_call.1} parent=31 // pred_check_branch
        %594 = sbr.rel (%p592) target = $region48
      $region47: #{tpu_custom_call.1} parent=31 // pred_region
        _
      $region48: #{tpu_custom_call.1} parent=31 // pred_fallthru
        _
    $region32: #{tpu_custom_call.1} parent=5 // pred_fallthru
      _
    %p595 = scmp.le.s32.totalorder 2, %s11
    // Predicated region
    $region49: #{tpu_custom_call.1} parent=5 // pred_check
      %p596 = pneg %p595
    $region50: #{tpu_custom_call.1} parent=5 // pred_check_branch
      %598 = sbr.rel (%p596) target = $region52
    $region51: #{tpu_custom_call.1} parent=5 // pred_region
      %s599 = ssub.s32 %s11, 2
      // Predicated region
      $region53: #{tpu_custom_call.1} parent=51 // pred_check
        %p600 = pneg %p150
      $region54: #{tpu_custom_call.1} parent=51 // pred_check_branch
        %602 = sbr.rel (%p600) target = $region56
      $region55: #{tpu_custom_call.1} parent=51 // pred_region
        %p603 = scmp.lt.s32.totalorder %s24, 1
        %s604 = scalar_select %p603, %s24, 1
        %p605 = scmp.lt.s32.totalorder %s25, 0
        %s606 = scalar_select %p605, %s25, 0
        %s607 = sadd.s32 %s606, %s604
        %s608 = scalar_lea.vmem %s3, %s607
      $region56: #{tpu_custom_call.1} parent=51 // pred_fallthru
        _
      // Predicated region
      $region57: #{tpu_custom_call.1} parent=51 // pred_check
        %p609 = pneg %p178
      $region58: #{tpu_custom_call.1} parent=51 // pred_check_branch
        %611 = sbr.rel (%p609) target = $region60
      $region59: #{tpu_custom_call.1} parent=51 // pred_region
        %p612 = scmp.lt.s32.totalorder %s24, 1
        %s613 = scalar_select %p612, %s24, 1
        %p614 = scmp.lt.s32.totalorder %s25, 0
        %s615 = scalar_select %p614, %s25, 0
        %s616 = sadd.s32 %s615, %s613
        %s617 = scalar_lea.vmem %s4, %s616
      $region60: #{tpu_custom_call.1} parent=51 // pred_fallthru
        _
    $region52: #{tpu_custom_call.1} parent=5 // pred_fallthru
      _
  $region6: #{tpu_custom_call.1} parent=0 // loop_footer
    %s15 = sadd.s32 1, %s11
  $region7: #{tpu_custom_call.1} parent=0 // loop_footer_branch
    %10 = sbr.rel target = $region3
  $region8: #{tpu_custom_call.1} parent=0 // loop_exit
    _

</llo_original>
